<compile_context>
chip_gen: v7x
topology: tpu7x:2x2x1
jax: 0.10.0
libtpu: 0.0.40
codegen_flags: <defaults>
</compile_context>

<pallas_src>
import functools

import jax
import jax.numpy as jnp
from jax.experimental import pallas as pl
from jax.experimental.pallas import tpu as pltpu


def bahdanau_attention_kernel(q_ref, wq_ref, keys_ref, ve_ref, mask_ref,
                              values_ref, ctx_ref, attn_ref,
                              m_sc, l_sc, acc_sc, qp_sc, e_sc,
                              *, n_s_blocks, s_blk):
    # q_ref:      [Bb, Q]       block of queries (batch on sublanes)
    # wq_ref:     [Q, H]        query_layer weight, pre-transposed (shared)
    # keys_ref:   [Bb, Sb, H]   s-block of already-projected keys
    # ve_ref:     [1, H]        energy_layer weight row (shared)
    # mask_ref:   [Bb, Sb]      int; 0 == masked out
    # values_ref: [Bb, Sb, V]   s-block of values
    # ctx_ref:    [Bb, V]       context output (resident across the S axis)
    # attn_ref:   [Bb, S]       attention scores output (resident across S)
    # m_sc/l_sc:  [Bb, 1]       online-softmax running max / denominator
    # acc_sc:     [Bb, V]       running (unnormalized) context accumulator
    # qp_sc:      [Bb, H]       projected query (computed once per batch block)
    # e_sc:       [n_s, Bb, Sb] raw masked energies, one slot per s-block
    s = pl.program_id(1)

    @pl.when(s == 0)
    def _init():
        m_sc[...] = jnp.full(m_sc.shape, -jnp.inf, dtype=m_sc.dtype)
        l_sc[...] = jnp.zeros(l_sc.shape, dtype=l_sc.dtype)
        acc_sc[...] = jnp.zeros(acc_sc.shape, dtype=acc_sc.dtype)
        # Batched query projection: one M=Bb GEMM on the MXU, done once per
        # batch block and stashed in VMEM scratch for all S steps.
        qp_sc[...] = jnp.dot(q_ref[...].astype(jnp.float32),
                             wq_ref[...].astype(jnp.float32),
                             preferred_element_type=jnp.float32)

    # Energy: v . tanh(Wq q + keys).  EUP tanh + VPU multiply + XLU lane
    # reduce keeps the MXU free.  Math in f32 (bf16 inputs are upcast after
    # load: halves HBM bytes, safe on v5e).
    keys = keys_ref[...].astype(jnp.float32)                    # [Bb, Sb, H]
    t = jnp.tanh(qp_sc[...][:, None, :] + keys)                 # [Bb, Sb, H]
    ve = ve_ref[...].astype(jnp.float32)                        # [1, H]
    e = jnp.sum(t * ve[None, :, :], axis=-1)                    # [Bb, Sb]
    e = jnp.where(mask_ref[...] == 0, -jnp.inf, e)              # masked_fill_

    # Stash raw masked energies for this s-block (dynamic index only on the
    # leading scratch dim); they are normalized with the *global* max and
    # denominator at the last step.
    e_sc[s] = e

    # Online softmax running statistics and context accumulation.
    m_prev = m_sc[...]
    m_new = jnp.maximum(m_prev, jnp.max(e, axis=-1, keepdims=True))   # [Bb,1]
    not_seen = m_new == -jnp.inf        # row fully masked so far (avoid NaN)
    alpha = jnp.where(not_seen, 0.0, jnp.exp(m_prev - m_new))
    p = jnp.where(not_seen, 0.0, jnp.exp(e - m_new))                  # [Bb,Sb]
    l_sc[...] = alpha * l_sc[...] + jnp.sum(p, axis=-1, keepdims=True)
    vals = values_ref[...].astype(jnp.float32)                        # [Bb,Sb,V]
    acc_sc[...] = alpha * acc_sc[...] + jnp.sum(p[:, :, None] * vals, axis=1)
    m_sc[...] = m_new

    @pl.when(s == n_s_blocks - 1)
    def _finalize():
        m = m_sc[...]                                                 # [Bb,1]
        l = l_sc[...]                                                 # [Bb,1]
        # Exact divides (approx reciprocal removed per review): the denominator
        # is a per-row scalar, so exactness is essentially free.  Fully-masked
        # rows yield NaN (0/0 and exp(-inf - -inf)), matching the PyTorch -inf
        # reference behaviour.
        ctx_ref[...] = (acc_sc[...] / l).astype(ctx_ref.dtype)
        for j in range(n_s_blocks):    # static unroll; lane-aligned stores
            attn_ref[:, pl.ds(j * s_blk, s_blk)] = (
                jnp.exp(e_sc[j] - m) / l).astype(attn_ref.dtype)


def _pick_s_blk(S, max_s_blk=512):
    """Sequence tile: full S when small, else a multiple-of-128 divisor."""
    if S <= max_s_blk:
        return S
    for cand in range(max_s_blk, 0, -128):
        if S % cand == 0:
            return cand
    return S


def _pick_b_blk(B, S, s_blk, Q, H, V, key_bytes, val_bytes, budget_bytes):
    """Largest batch tile (divisor of B, multiple of 8 or == B) fitting the
    VMEM budget.  NOTE: on v7x one may additionally want >= 2 grid steps so
    both TensorCores get work; single-TC v5e/v6e can take b_blk = B."""
    per_b = (2 * (Q * 4 + s_blk * H * key_bytes + s_blk * 4
                  + s_blk * V * val_bytes)          # double-buffered inputs
             + 2 * (V + S) * 4                      # resident output blocks
             + (2 + V + H + S) * 4                  # m/l/acc/qproj/e scratch
             + 3 * s_blk * H * 4)                   # tanh / p temporaries
    cap = max(1, budget_bytes // per_b)
    cands = [d for d in range(1, B + 1)
             if B % d == 0 and (d % 8 == 0 or d == B)]
    fits = [d for d in cands if d <= cap]
    return max(fits) if fits else min(cands)


def bahdanau_attention(query, projected_keys, mask, values, wq, v_energy, *,
                       b_blk=None, s_blk=None,
                       vmem_limit_bytes=32 * 1024 * 1024,
                       vmem_block_budget=20 * 1024 * 1024):
    """query [B,1,Q], projected_keys [B,S,H], mask [B,1,S] (0 == masked),
    values [B,S,V], wq [Q,H] (= query_layer.weight.T), v_energy [1,H]
    (= energy_layer.weight).  Returns (context [B,1,V], attention [B,1,S])."""
    B, _, Q = query.shape
    _, S, H = projected_keys.shape
    V = values.shape[-1]

    # Flatten the size-1 query/mask dims so batch packs onto sublanes and the
    # kernel's loads/stores are dense 2-D tiles.
    q2 = query.reshape(B, Q)
    mask2 = mask.reshape(B, S).astype(jnp.int32)

    if s_blk is None:
        s_blk = _pick_s_blk(S)
    assert S % s_blk == 0 and (s_blk % 128 == 0 or s_blk == S), \
        "s_blk must divide S and be a multiple of 128 (or the full S)"
    if b_blk is None:
        b_blk = _pick_b_blk(B, S, s_blk, Q, H, V,
                            projected_keys.dtype.itemsize,
                            values.dtype.itemsize,
                            vmem_block_budget)
    assert B % b_blk == 0 and (b_blk % 8 == 0 or b_blk == B), \
        "b_blk must divide B and be a multiple of 8 (or the full B)"

    n_s_blocks = S // s_blk
    grid = (B // b_blk, n_s_blocks)

    kernel = functools.partial(bahdanau_attention_kernel,
                               n_s_blocks=n_s_blocks, s_blk=s_blk)

    ctx2, attn2 = pl.pallas_call(
        kernel,
        out_shape=(jax.ShapeDtypeStruct((B, V), values.dtype),
                   jax.ShapeDtypeStruct((B, S), jnp.float32)),
        grid=grid,
        in_specs=[
            pl.BlockSpec((b_blk, Q),        lambda b, s: (b, 0)),   # query
            pl.BlockSpec((Q, H),            lambda b, s: (0, 0)),   # Wq (shared)
            pl.BlockSpec((b_blk, s_blk, H), lambda b, s: (b, s, 0)),# keys
            pl.BlockSpec((1, H),            lambda b, s: (0, 0)),   # energy row
            pl.BlockSpec((b_blk, s_blk),    lambda b, s: (b, s)),   # mask
            pl.BlockSpec((b_blk, s_blk, V), lambda b, s: (b, s, 0)),# values
        ],
        out_specs=(
            pl.BlockSpec((b_blk, V), lambda b, s: (b, 0)),   # context (resident)
            pl.BlockSpec((b_blk, S), lambda b, s: (b, 0)),   # attention (resident)
        ),
        scratch_shapes=[
            pltpu.VMEM((b_blk, 1), jnp.float32),                    # running max
            pltpu.VMEM((b_blk, 1), jnp.float32),                    # running denom
            pltpu.VMEM((b_blk, V), jnp.float32),                    # ctx accumulator
            pltpu.VMEM((b_blk, H), jnp.float32),                    # projected query
            pltpu.VMEM((n_s_blocks, b_blk, s_blk), jnp.float32),    # raw energies
        ],
        compiler_params=pltpu.CompilerParams(
            dimension_semantics=("parallel", "arbitrary"),
            vmem_limit_bytes=vmem_limit_bytes),
    )(q2, wq, projected_keys, v_energy, mask2, values)

    return ctx2.reshape(B, 1, V), attn2.reshape(B, 1, S)


def _reference(query, projected_keys, mask, values, wq, v_energy):
    q = query @ wq                                               # [B,1,H]
    e = jnp.tanh(q + projected_keys) @ v_energy.T                # [B,S,1]
    scores = jnp.swapaxes(e, 1, 2)                               # [B,1,S]
    scores = jnp.where(mask == 0, -jnp.inf, scores)
    attn = jax.nn.softmax(scores, axis=2)
    ctx = jnp.einsum('bqs,bsv->bqv', attn, values)
    return ctx, attn


if __name__ == "__main__":
    # Module hyper-params: hidden_size=32 -> query_size=32; projected_keys come
    # in already projected to hidden_size; values are encoder states of 2*hidden.
    hidden = 32
    Q = hidden
    H = hidden
    V = 2 * hidden

    key = jax.random.PRNGKey(0)
    k_q, k_k, k_v, k_wq, k_ve, k_q2, k_k2, k_v2 = jax.random.split(key, 8)

    # nn.Linear-like deterministic init.  wq is stored transposed ([Q,H]);
    # v_energy keeps the native energy_layer.weight layout ([1,H]).
    wq = jax.random.uniform(k_wq, (Q, H), dtype=jnp.float32,
                            minval=-1.0, maxval=1.0) / jnp.sqrt(Q)
    v_energy = jax.random.uniform(k_ve, (1, H), dtype=jnp.float32,
                                  minval=-1.0, maxval=1.0) / jnp.sqrt(H)

    # Tolerance: exact softmax normalization (approx reciprocal removed); the
    # remaining slack covers the default-precision f32 MXU matmul of the query
    # projection in both kernel and reference.
    RTOL = ATOL = 2e-3

    # --- Test 1: small module-scale shapes (single S block). ---------------
    B, S = 4, 8
    query = jax.random.normal(k_q, (B, 1, Q), dtype=jnp.float32)
    projected_keys = jax.random.normal(k_k, (B, S, H), dtype=jnp.float32)
    values = jax.random.normal(k_v, (B, S, V), dtype=jnp.float32)
    mask = jnp.array([[[1, 1, 1, 1, 1, 1, 1, 1]],
                      [[1, 1, 1, 1, 1, 0, 0, 0]],
                      [[1, 1, 1, 1, 0, 0, 0, 0]],
                      [[1, 1, 1, 1, 1, 1, 1, 0]]], dtype=jnp.int32)

    ctx, attn = bahdanau_attention(query, projected_keys, mask, values,
                                   wq, v_energy)
    jax.block_until_ready((ctx, attn))
    ctx_ref, attn_ref = _reference(query, projected_keys, mask, values,
                                   wq, v_energy)
    assert ctx.shape == (B, 1, V) and attn.shape == (B, 1, S)
    assert jnp.allclose(ctx, ctx_ref, rtol=RTOL, atol=ATOL)
    assert jnp.allclose(attn, attn_ref, rtol=RTOL, atol=ATOL)

    # --- Test 2: longer sequence exercising the online-softmax S tiling. ---
    B2, S2, s_blk2 = 4, 256, 128
    query2 = jax.random.normal(k_q2, (B2, 1, Q), dtype=jnp.float32)
    projected_keys2 = jax.random.normal(k_k2, (B2, S2, H), dtype=jnp.float32)
    values2 = jax.random.normal(k_v2, (B2, S2, V), dtype=jnp.float32)
    pos = jnp.arange(S2)[None, :]
    starts = jnp.array([0, 0, 0, 130])[:, None]
    ends = jnp.array([256, 100, 128, 200])[:, None]
    mask2 = ((pos >= starts) & (pos < ends)).astype(jnp.int32)[:, None, :]

    ctx2, attn2 = bahdanau_attention(query2, projected_keys2, mask2, values2,
                                     wq, v_energy, s_blk=s_blk2)
    jax.block_until_ready((ctx2, attn2))
    ctx2_ref, attn2_ref = _reference(query2, projected_keys2, mask2, values2,
                                     wq, v_energy)
    assert ctx2.shape == (B2, 1, V) and attn2.shape == (B2, 1, S2)
    assert jnp.allclose(ctx2, ctx2_ref, rtol=RTOL, atol=ATOL)
    assert jnp.allclose(attn2, attn2_ref, rtol=RTOL, atol=ATOL)

    print("KERNEL_OK")
</pallas_src>

<mosaic_0001>
module attributes {stable_mosaic.version = 11 : i64} {
  func.func @bahdanau_attention_kernel(%arg0: i32, %arg1: i32, %arg2: memref<4x32xf32, #tpu.memory_space<vmem>>, %arg3: memref<32x32xf32, #tpu.memory_space<vmem>>, %arg4: memref<4x8x32xf32, #tpu.memory_space<vmem>>, %arg5: memref<1x32xf32, #tpu.memory_space<vmem>>, %arg6: memref<4x8xi32, #tpu.memory_space<vmem>>, %arg7: memref<4x8x64xf32, #tpu.memory_space<vmem>>, %arg8: memref<4x64xf32, #tpu.memory_space<vmem>>, %arg9: memref<4x8xf32, #tpu.memory_space<vmem>>, %arg10: memref<4x1xf32, #tpu.memory_space<vmem>>, %arg11: memref<4x1xf32, #tpu.memory_space<vmem>>, %arg12: memref<4x64xf32, #tpu.memory_space<vmem>>, %arg13: memref<4x32xf32, #tpu.memory_space<vmem>>, %arg14: memref<1x4x8xf32, #tpu.memory_space<vmem>>) attributes {dimension_semantics = [#tpu.dimension_semantics<parallel>, #tpu.dimension_semantics<arbitrary>], iteration_bounds = array<i64: 1, 1>, scalar_prefetch = 0 : i64, scratch_operands = 5 : i64, tpu.core_type = #tpu.core_type<tc>, window_params = [{transform_indices = @transform_0, window_bounds = array<i64: 4, 32>}, {pipeline_mode = #tpu.pipeline_mode<synchronous>, transform_indices = @transform_1, window_bounds = array<i64: 32, 32>}, {transform_indices = @transform_2, window_bounds = array<i64: 4, 8, 32>}, {pipeline_mode = #tpu.pipeline_mode<synchronous>, transform_indices = @transform_3, window_bounds = array<i64: 1, 32>}, {transform_indices = @transform_4, window_bounds = array<i64: 4, 8>}, {transform_indices = @transform_5, window_bounds = array<i64: 4, 8, 64>}, {transform_indices = @transform_6, window_bounds = array<i64: 4, 64>}, {transform_indices = @transform_7, window_bounds = array<i64: 4, 8>}]} {
    %c0_i32 = arith.constant 0 : i32
    %0 = arith.cmpi eq, %arg1, %c0_i32 : i32
    %1 = arith.extui %0 : i1 to i32
    %c0_i32_0 = arith.constant 0 : i32
    %2 = arith.cmpi ne, %1, %c0_i32_0 : i32
    scf.if %2 {
      %cst_36 = arith.constant 0xFF800000 : f32
      %60 = vector.broadcast %cst_36 : f32 to vector<4x1xf32>
      %c0_37 = arith.constant 0 : index
      %c0_38 = arith.constant 0 : index
      %61 = vector.load %arg10[%c0_37, %c0_38] : memref<4x1xf32, #tpu.memory_space<vmem>>, vector<4x1xf32>
      tpu.vector_store %arg10[%c0_37, %c0_38], %60 {strides = array<i32>} : memref<4x1xf32, #tpu.memory_space<vmem>>, vector<4x1xf32>,
      %cst_39 = arith.constant 0.000000e+00 : f32
      %62 = vector.broadcast %cst_39 : f32 to vector<4x1xf32>
      %c0_40 = arith.constant 0 : index
      %c0_41 = arith.constant 0 : index
      %63 = vector.load %arg11[%c0_40, %c0_41] : memref<4x1xf32, #tpu.memory_space<vmem>>, vector<4x1xf32>
      tpu.vector_store %arg11[%c0_40, %c0_41], %62 {strides = array<i32>} : memref<4x1xf32, #tpu.memory_space<vmem>>, vector<4x1xf32>,
      %cst_42 = arith.constant 0.000000e+00 : f32
      %64 = vector.broadcast %cst_42 : f32 to vector<4x64xf32>
      %c0_43 = arith.constant 0 : index
      %c0_44 = arith.constant 0 : index
      %65 = vector.load %arg12[%c0_43, %c0_44] : memref<4x64xf32, #tpu.memory_space<vmem>>, vector<4x64xf32>
      tpu.vector_store %arg12[%c0_43, %c0_44], %64 {strides = array<i32>} : memref<4x64xf32, #tpu.memory_space<vmem>>, vector<4x64xf32>,
      %c0_45 = arith.constant 0 : index
      %c0_46 = arith.constant 0 : index
      %66 = vector.load %arg2[%c0_45, %c0_46] : memref<4x32xf32, #tpu.memory_space<vmem>>, vector<4x32xf32>
      %c0_47 = arith.constant 0 : index
      %c0_48 = arith.constant 0 : index
      %67 = vector.load %arg3[%c0_47, %c0_48] : memref<32x32xf32, #tpu.memory_space<vmem>>, vector<32x32xf32>
      %cst_49 = arith.constant dense<0.000000e+00> : vector<4x32xf32>
      %68 = tpu.matmul %66, %67, %cst_49 {dimension_numbers = #tpu.dot_dimension_numbers<[1], [0], [0], [1], [0, 0, 1, 1], [], []>} : vector<4x32xf32>, vector<32x32xf32>, vector<4x32xf32> -> vector<4x32xf32>
      %c0_50 = arith.constant 0 : index
      %c0_51 = arith.constant 0 : index
      %69 = vector.load %arg13[%c0_50, %c0_51] : memref<4x32xf32, #tpu.memory_space<vmem>>, vector<4x32xf32>
      tpu.vector_store %arg13[%c0_50, %c0_51], %68 {strides = array<i32>} : memref<4x32xf32, #tpu.memory_space<vmem>>, vector<4x32xf32>,
    } else {
    }
    %c0 = arith.constant 0 : index
    %c0_1 = arith.constant 0 : index
    %c0_2 = arith.constant 0 : index
    %3 = vector.load %arg4[%c0, %c0_1, %c0_2] : memref<4x8x32xf32, #tpu.memory_space<vmem>>, vector<4x8x32xf32>
    %c0_3 = arith.constant 0 : index
    %c0_4 = arith.constant 0 : index
    %4 = vector.load %arg13[%c0_3, %c0_4] : memref<4x32xf32, #tpu.memory_space<vmem>>, vector<4x32xf32>
    %5 = vector.shape_cast %4 : vector<4x32xf32> to vector<4x1x32xf32>
    %6 = vector.broadcast %5 : vector<4x1x32xf32> to vector<4x8x32xf32>
    %7 = arith.addf %6, %3 : vector<4x8x32xf32>
    %8 = math.tanh %7 : vector<4x8x32xf32>
    %c0_5 = arith.constant 0 : index
    %c0_6 = arith.constant 0 : index
    %9 = vector.load %arg5[%c0_5, %c0_6] : memref<1x32xf32, #tpu.memory_space<vmem>>, vector<1x32xf32>
    %10 = vector.shape_cast %9 : vector<1x32xf32> to vector<1x1x32xf32>
    %11 = vector.broadcast %10 : vector<1x1x32xf32> to vector<4x8x32xf32>
    %12 = arith.mulf %8, %11 : vector<4x8x32xf32>
    %cst = arith.constant dense<0.000000e+00> : vector<4x8xf32>
    %13 = vector.multi_reduction <add>, %12, %cst [2] : vector<4x8x32xf32> to vector<4x8xf32>
    %c0_7 = arith.constant 0 : index
    %c0_8 = arith.constant 0 : index
    %14 = vector.load %arg6[%c0_7, %c0_8] : memref<4x8xi32, #tpu.memory_space<vmem>>, vector<4x8xi32>
    %c0_i32_9 = arith.constant 0 : i32
    %15 = vector.broadcast %c0_i32_9 : i32 to vector<4x8xi32>
    %16 = arith.cmpi eq, %14, %15 : vector<4x8xi32>
    %cst_10 = arith.constant 0xFF800000 : f32
    %17 = vector.broadcast %cst_10 : f32 to vector<4x8xf32>
    %18 = arith.select %16, %17, %13 : vector<4x8xi1>, vector<4x8xf32>
    %19 = arith.index_cast %arg1 : i32 to index
    %c0_11 = arith.constant 0 : index
    %c0_12 = arith.constant 0 : index
    %20 = vector.load %arg14[%19, %c0_11, %c0_12] : memref<1x4x8xf32, #tpu.memory_space<vmem>>, vector<1x4x8xf32>
    %21 = vector.shape_cast %20 : vector<1x4x8xf32> to vector<4x8xf32>
    %22 = vector.shape_cast %18 : vector<4x8xf32> to vector<1x4x8xf32>
    tpu.vector_store %arg14[%19, %c0_11, %c0_12], %22 {strides = array<i32>} : memref<1x4x8xf32, #tpu.memory_space<vmem>>, vector<1x4x8xf32>,
    %c0_13 = arith.constant 0 : index
    %c0_14 = arith.constant 0 : index
    %23 = vector.load %arg10[%c0_13, %c0_14] : memref<4x1xf32, #tpu.memory_space<vmem>>, vector<4x1xf32>
    %cst_15 = arith.constant dense<0xFF800000> : vector<4xf32>
    %24 = vector.multi_reduction <maximumf>, %18, %cst_15 [1] : vector<4x8xf32> to vector<4xf32>
    %25 = vector.shape_cast %24 : vector<4xf32> to vector<4x1xf32>
    %26 = arith.maximumf %23, %25 : vector<4x1xf32>
    %cst_16 = arith.constant 0xFF800000 : f32
    %27 = vector.broadcast %cst_16 : f32 to vector<4x1xf32>
    %28 = arith.cmpf oeq, %26, %27 : vector<4x1xf32>
    %29 = arith.subf %23, %26 : vector<4x1xf32>
    %30 = math.exp %29 : vector<4x1xf32>
    %cst_17 = arith.constant 0.000000e+00 : f32
    %31 = vector.broadcast %cst_17 : f32 to vector<4x1xf32>
    %32 = arith.select %28, %31, %30 : vector<4x1xi1>, vector<4x1xf32>
    %33 = vector.broadcast %26 : vector<4x1xf32> to vector<4x8xf32>
    %34 = arith.subf %18, %33 : vector<4x8xf32>
    %35 = math.exp %34 : vector<4x8xf32>
    %cst_18 = arith.constant 0.000000e+00 : f32
    %36 = vector.shape_cast %28 : vector<4x1xi1> to vector<4x1xi1>
    %37 = vector.broadcast %36 : vector<4x1xi1> to vector<4x8xi1>
    %38 = vector.broadcast %cst_18 : f32 to vector<4x8xf32>
    %39 = arith.select %37, %38, %35 : vector<4x8xi1>, vector<4x8xf32>
    %c0_19 = arith.constant 0 : index
    %c0_20 = arith.constant 0 : index
    %40 = vector.load %arg11[%c0_19, %c0_20] : memref<4x1xf32, #tpu.memory_space<vmem>>, vector<4x1xf32>
    %41 = arith.mulf %32, %40 : vector<4x1xf32>
    %cst_21 = arith.constant dense<0.000000e+00> : vector<4xf32>
    %42 = vector.multi_reduction <add>, %39, %cst_21 [1] : vector<4x8xf32> to vector<4xf32>
    %43 = vector.shape_cast %42 : vector<4xf32> to vector<4x1xf32>
    %44 = arith.addf %41, %43 : vector<4x1xf32>
    %c0_22 = arith.constant 0 : index
    %c0_23 = arith.constant 0 : index
    %45 = vector.load %arg11[%c0_22, %c0_23] : memref<4x1xf32, #tpu.memory_space<vmem>>, vector<4x1xf32>
    tpu.vector_store %arg11[%c0_22, %c0_23], %44 {strides = array<i32>} : memref<4x1xf32, #tpu.memory_space<vmem>>, vector<4x1xf32>,
    %c0_24 = arith.constant 0 : index
    %c0_25 = arith.constant 0 : index
    %c0_26 = arith.constant 0 : index
    %46 = vector.load %arg7[%c0_24, %c0_25, %c0_26] : memref<4x8x64xf32, #tpu.memory_space<vmem>>, vector<4x8x64xf32>
    %c0_27 = arith.constant 0 : index
    %c0_28 = arith.constant 0 : index
    %47 = vector.load %arg12[%c0_27, %c0_28] : memref<4x64xf32, #tpu.memory_space<vmem>>, vector<4x64xf32>
    %48 = vector.broadcast %32 : vector<4x1xf32> to vector<4x64xf32>
    %49 = arith.mulf %48, %47 : vector<4x64xf32>
    %50 = vector.shape_cast %39 : vector<4x8xf32> to vector<4x8x1xf32>
    %51 = vector.broadcast %50 : vector<4x8x1xf32> to vector<4x8x64xf32>
    %52 = arith.mulf %51, %46 : vector<4x8x64xf32>
    %cst_29 = arith.constant dense<0.000000e+00> : vector<4x64xf32>
    %53 = vector.multi_reduction <add>, %52, %cst_29 [1] : vector<4x8x64xf32> to vector<4x64xf32>
    %54 = arith.addf %49, %53 : vector<4x64xf32>
    %c0_30 = arith.constant 0 : index
    %c0_31 = arith.constant 0 : index
    %55 = vector.load %arg12[%c0_30, %c0_31] : memref<4x64xf32, #tpu.memory_space<vmem>>, vector<4x64xf32>
    tpu.vector_store %arg12[%c0_30, %c0_31], %54 {strides = array<i32>} : memref<4x64xf32, #tpu.memory_space<vmem>>, vector<4x64xf32>,
    %c0_32 = arith.constant 0 : index
    %c0_33 = arith.constant 0 : index
    %56 = vector.load %arg10[%c0_32, %c0_33] : memref<4x1xf32, #tpu.memory_space<vmem>>, vector<4x1xf32>
    tpu.vector_store %arg10[%c0_32, %c0_33], %26 {strides = array<i32>} : memref<4x1xf32, #tpu.memory_space<vmem>>, vector<4x1xf32>,
    %c0_i32_34 = arith.constant 0 : i32
    %57 = arith.cmpi eq, %arg1, %c0_i32_34 : i32
    %58 = arith.extui %57 : i1 to i32
    %c0_i32_35 = arith.constant 0 : i32
    %59 = arith.cmpi ne, %58, %c0_i32_35 : i32
    scf.if %59 {
      %c0_36 = arith.constant 0 : index
      %c0_37 = arith.constant 0 : index
      %60 = vector.load %arg10[%c0_36, %c0_37] : memref<4x1xf32, #tpu.memory_space<vmem>>, vector<4x1xf32>
      %c0_38 = arith.constant 0 : index
      %c0_39 = arith.constant 0 : index
      %61 = vector.load %arg11[%c0_38, %c0_39] : memref<4x1xf32, #tpu.memory_space<vmem>>, vector<4x1xf32>
      %c0_40 = arith.constant 0 : index
      %c0_41 = arith.constant 0 : index
      %62 = vector.load %arg12[%c0_40, %c0_41] : memref<4x64xf32, #tpu.memory_space<vmem>>, vector<4x64xf32>
      %63 = vector.broadcast %61 : vector<4x1xf32> to vector<4x64xf32>
      %64 = arith.divf %62, %63 : vector<4x64xf32>
      %c0_42 = arith.constant 0 : index
      %c0_43 = arith.constant 0 : index
      %65 = vector.load %arg8[%c0_42, %c0_43] : memref<4x64xf32, #tpu.memory_space<vmem>>, vector<4x64xf32>
      tpu.vector_store %arg8[%c0_42, %c0_43], %64 {strides = array<i32>} : memref<4x64xf32, #tpu.memory_space<vmem>>, vector<4x64xf32>,
      %c0_44 = arith.constant 0 : index
      %c0_45 = arith.constant 0 : index
      %c0_46 = arith.constant 0 : index
      %66 = vector.load %arg14[%c0_44, %c0_45, %c0_46] : memref<1x4x8xf32, #tpu.memory_space<vmem>>, vector<1x4x8xf32>
      %67 = vector.shape_cast %66 : vector<1x4x8xf32> to vector<4x8xf32>
      %68 = vector.broadcast %60 : vector<4x1xf32> to vector<4x8xf32>
      %69 = arith.subf %67, %68 : vector<4x8xf32>
      %70 = math.exp %69 : vector<4x8xf32>
      %71 = vector.broadcast %61 : vector<4x1xf32> to vector<4x8xf32>
      %72 = arith.divf %70, %71 : vector<4x8xf32>
      %c0_47 = arith.constant 0 : index
      %c0_48 = arith.constant 0 : index
      %73 = vector.load %arg9[%c0_47, %c0_48] : memref<4x8xf32, #tpu.memory_space<vmem>>, vector<4x8xf32>
      tpu.vector_store %arg9[%c0_47, %c0_48], %72 {strides = array<i32>} : memref<4x8xf32, #tpu.memory_space<vmem>>, vector<4x8xf32>,
    } else {
    }
    return
  }
  func.func @transform_0(%arg0: i32, %arg1: i32) -> (i32, i32) {
    %c0_i32 = arith.constant 0 : i32
    %c0_i32_0 = arith.constant 0 : i32
    return %arg0, %c0_i32 : i32, i32
  }
  func.func @transform_1(%arg0: i32, %arg1: i32) -> (i32, i32) {
    %c0_i32 = arith.constant 0 : i32
    %c0_i32_0 = arith.constant 0 : i32
    %c0_i32_1 = arith.constant 0 : i32
    return %c0_i32, %c0_i32_0 : i32, i32
  }
  func.func @transform_2(%arg0: i32, %arg1: i32) -> (i32, i32, i32) {
    %c0_i32 = arith.constant 0 : i32
    %c0_i32_0 = arith.constant 0 : i32
    return %arg0, %arg1, %c0_i32 : i32, i32, i32
  }
  func.func @transform_3(%arg0: i32, %arg1: i32) -> (i32, i32) {
    %c0_i32 = arith.constant 0 : i32
    %c0_i32_0 = arith.constant 0 : i32
    %c0_i32_1 = arith.constant 0 : i32
    return %c0_i32, %c0_i32_0 : i32, i32
  }
  func.func @transform_4(%arg0: i32, %arg1: i32) -> (i32, i32) {
    %c0_i32 = arith.constant 0 : i32
    return %arg0, %arg1 : i32, i32
  }
  func.func @transform_5(%arg0: i32, %arg1: i32) -> (i32, i32, i32) {
    %c0_i32 = arith.constant 0 : i32
    %c0_i32_0 = arith.constant 0 : i32
    return %arg0, %arg1, %c0_i32 : i32, i32, i32
  }
  func.func @transform_6(%arg0: i32, %arg1: i32) -> (i32, i32) {
    %c0_i32 = arith.constant 0 : i32
    %c0_i32_0 = arith.constant 0 : i32
    return %arg0, %c0_i32 : i32, i32
  }
  func.func @transform_7(%arg0: i32, %arg1: i32) -> (i32, i32) {
    %c0_i32 = arith.constant 0 : i32
    %c0_i32_0 = arith.constant 0 : i32
    return %arg0, %c0_i32 : i32, i32
  }
}

</mosaic_0001>

<llo_original>
// kernel: tpu_custom_call.1
$region0: #{tpu_custom_call.1}
  #allocation0 [shape = 'u32[]', space=smem, size = 0x4, offset = 0x4, fixed_abs, tag = 'smem constant byte address 0x4 - core index']
  #allocation1 [shape = 'u32[144,128]{1,0:T(1,128)}', space=vmem, size = 0x12000, scoped, tag = 'internal scratch']
  #allocation2 [shape = 'f32[4,1]{1,0:T(4,128)}', space=vmem, size = 0x800, scoped, tag = 'scratch operand']
  #allocation3 [shape = 'f32[4,1]{1,0:T(4,128)}', space=vmem, size = 0x800, scoped, tag = 'scratch operand']
  #allocation4 [shape = 'f32[4,64]{1,0:T(4,128)}', space=vmem, size = 0x800, scoped, tag = 'scratch operand']
  #allocation5 [shape = 'f32[4,32]{1,0:T(4,128)}', space=vmem, size = 0x800, scoped, tag = 'scratch operand']
  #allocation6 [shape = 'f32[1,4,8]{2,1,0:T(4,128)}', space=vmem, size = 0x800, scoped, tag = 'scratch operand']
  %s0 = inlined_call_operand.hbm [shape: f32[4,32], index: 0, kind: input, shape index: {}]
  %s1 = inlined_call_operand.hbm [shape: f32[32,32], index: 1, kind: input, shape index: {}]
  %s2 = inlined_call_operand.hbm [shape: f32[4,8,32], index: 2, kind: input, shape index: {}]
  %s3 = inlined_call_operand.vmem [shape: f32[1,32], index: 3, kind: input, shape index: {}]
  %s4 = inlined_call_operand.vmem [shape: s32[4,8], index: 4, kind: input, shape index: {}]
  %s5 = inlined_call_operand.hbm [shape: f32[4,8,64], index: 5, kind: input, shape index: {}]
  %s6 = inlined_call_operand.hbm [shape: f32[4,64], index: 6, kind: output, shape index: {0}]
  %s7 = inlined_call_operand.hbm [shape: f32[4,8], index: 7, kind: output, shape index: {1}]
  %8 = xla_tuple %s6, %s7
  %s9 = sld [smem:[#allocation0]]
  $region66: #{tpu_custom_call.1} parent=0
    _
  %s11 = ssub.s32 1, %s9
  %s12 = scalar_select 0, %s11, %s9
  $region1: #{tpu_custom_call.1} parent=0
    #allocation7 [shape = 'u8[2048]{0}', space=vmem, size = 0x800, scoped, tag = 'input window, operand 0, single buffered']
    #allocation8 [shape = 's32[1]{0}', space=sflag, size = 0x4, scoped, tag = 'scoped memory for tpu_custom_call.1']
    #allocation9 [shape = 's32[1]{0}', space=sflag, size = 0x4, scoped, tag = 'scoped memory for tpu_custom_call.1']
    #allocation10 [shape = 'u8[16384]{0}', space=vmem, size = 0x4000, scoped, tag = 'input window, operand 1, single buffered']
    #allocation11 [shape = 's32[1]{0}', space=sflag, size = 0x4, scoped, tag = 'scoped memory for tpu_custom_call.1']
    #allocation12 [shape = 'u8[16384]{0}', space=vmem, size = 0x4000, scoped, tag = 'input window, operand 2, single buffered']
    #allocation13 [shape = 'u8[16384]{0}', space=vmem, size = 0x4000, scoped, tag = 'input window, operand 5, single buffered']
    #allocation14 [shape = 's32[1]{0}', space=sflag, size = 0x4, scoped, tag = 'scoped memory for tpu_custom_call.1']
    #allocation15 [shape = 'u8[2048]{0}', space=vmem, size = 0x800, scoped, tag = 'output window, operand 0, single buffered']
    #allocation16 [shape = 'u8[2048]{0}', space=vmem, size = 0x800, scoped, tag = 'output window, operand 1, single buffered']
    #allocation17 [shape = 's32[1]{0}', space=sflag, size = 0x4, scoped, tag = 'scoped memory for tpu_custom_call.1']
    %13 = vsyncpa [#allocation8], 0
    %14 = vsyncpa [#allocation11], 0
    %15 = vsyncpa [#allocation14], 0
    %16 = vsyncpa [#allocation9], 0
    %17 = vsyncpa [#allocation17], 0
    // Predicated region
    $region2: #{tpu_custom_call.1} parent=1 // pred_check
      _
    $region3: #{tpu_custom_call.1} parent=1 // pred_check_branch
      %19 = sbr.rel (0) target = $region5
    $region4: #{tpu_custom_call.1} parent=1 // pred_region
      %s21 = ssub.s32 64, 64
      %22 = vsyncadd [#allocation8], %s21
      %s24 = sshll.u32 [#allocation7], 4
      %s25 = int_to_ptr.vmem [resolvable:$true] %s24
      %27 = dma.hbm_to_vmem [thread:$0]  %s0, 64, %s25, [#allocation8]
    $region5: #{tpu_custom_call.1} parent=1 // pred_fallthru
      _
    // Predicated region
    $region6: #{tpu_custom_call.1} parent=1 // pred_check
      _
    $region7: #{tpu_custom_call.1} parent=1 // pred_check_branch
      %29 = sbr.rel (0) target = $region9
    $region8: #{tpu_custom_call.1} parent=1 // pred_region
      %s31 = ssub.s32 512, 512
      %32 = vsyncadd [#allocation11], %s31
      %s33 = sshll.u32 [#allocation10], 4
      %s34 = int_to_ptr.vmem [resolvable:$true] %s33
      %39 = dma.hbm_to_vmem [thread:$0]  %s1, 512, %s34, [#allocation11], 128, 128, 8
    $region9: #{tpu_custom_call.1} parent=1 // pred_fallthru
      _
    // Predicated region
    $region10: #{tpu_custom_call.1} parent=1 // pred_check
      _
    $region11: #{tpu_custom_call.1} parent=1 // pred_check_branch
      %41 = sbr.rel (0) target = $region13
    $region12: #{tpu_custom_call.1} parent=1 // pred_region
      %s43 = ssub.s32 512, 512
      %44 = vsyncadd [#allocation11], %s43
      %s45 = sshll.u32 [#allocation12], 4
      %s46 = int_to_ptr.vmem [resolvable:$true] %s45
      %51 = dma.hbm_to_vmem [thread:$0]  %s2, 512, %s46, [#allocation11], 128, 128, 8
    $region13: #{tpu_custom_call.1} parent=1 // pred_fallthru
      _
    // Predicated region
    $region14: #{tpu_custom_call.1} parent=1 // pred_check
      _
    $region15: #{tpu_custom_call.1} parent=1 // pred_check_branch
      %53 = sbr.rel (0) target = $region17
    $region16: #{tpu_custom_call.1} parent=1 // pred_region
      _
    $region17: #{tpu_custom_call.1} parent=1 // pred_fallthru
      _
    // Predicated region
    $region18: #{tpu_custom_call.1} parent=1 // pred_check
      _
    $region19: #{tpu_custom_call.1} parent=1 // pred_check_branch
      %55 = sbr.rel (0) target = $region21
    $region20: #{tpu_custom_call.1} parent=1 // pred_region
      _
    $region21: #{tpu_custom_call.1} parent=1 // pred_fallthru
      _
    // Predicated region
    $region22: #{tpu_custom_call.1} parent=1 // pred_check
      _
    $region23: #{tpu_custom_call.1} parent=1 // pred_check_branch
      %57 = sbr.rel (0) target = $region25
    $region24: #{tpu_custom_call.1} parent=1 // pred_region
      %s59 = ssub.s32 512, 512
      %60 = vsyncadd [#allocation14], %s59
      %s61 = sshll.u32 [#allocation13], 4
      %s62 = int_to_ptr.vmem [resolvable:$true] %s61
      %67 = dma.hbm_to_vmem [thread:$0]  %s5, 512, %s62, [#allocation14], 128, 128, 8
    $region25: #{tpu_custom_call.1} parent=1 // pred_fallthru
      _
    // Predicated region
    $region26: #{tpu_custom_call.1} parent=1 // pred_check
      _
    $region27: #{tpu_custom_call.1} parent=1 // pred_check_branch
      %69 = sbr.rel (0) target = $region29
    $region28: #{tpu_custom_call.1} parent=1 // pred_region
      %70 = dma.done [#allocation8], 64
    $region29: #{tpu_custom_call.1} parent=1 // pred_fallthru
      _
    // Predicated region
    $region30: #{tpu_custom_call.1} parent=1 // pred_check
      _
    $region31: #{tpu_custom_call.1} parent=1 // pred_check_branch
      %72 = sbr.rel (0) target = $region33
    $region32: #{tpu_custom_call.1} parent=1 // pred_region
      %73 = dma.done [#allocation11], 512
    $region33: #{tpu_custom_call.1} parent=1 // pred_fallthru
      _
    // Predicated region
    $region34: #{tpu_custom_call.1} parent=1 // pred_check
      _
    $region35: #{tpu_custom_call.1} parent=1 // pred_check_branch
      %75 = sbr.rel (0) target = $region37
    $region36: #{tpu_custom_call.1} parent=1 // pred_region
      %76 = dma.done [#allocation11], 512
    $region37: #{tpu_custom_call.1} parent=1 // pred_fallthru
      _
    // Predicated region
    $region38: #{tpu_custom_call.1} parent=1 // pred_check
      _
    $region39: #{tpu_custom_call.1} parent=1 // pred_check_branch
      %78 = sbr.rel (0) target = $region41
    $region40: #{tpu_custom_call.1} parent=1 // pred_region
      %79 = dma.done [#allocation14], 512
    $region41: #{tpu_custom_call.1} parent=1 // pred_fallthru
      _
    %p80 = scmp.eq.s32.totalorder 0, 0
    // Predicated region
    $region42: #{tpu_custom_call.1} parent=1 // pred_check
      %p81 = pneg %p80
    $region43: #{tpu_custom_call.1} parent=1 // pred_check_branch
      %83 = sbr.rel (%p81) target = $region45
    $region44: #{tpu_custom_call.1} parent=1 // pred_region
      %vm84 = vcmask 3072
      %85 = vst.msk [vmem:[#allocation2] sm:$0xf] %vm84, -inf
      %86 = vst.msk [vmem:[#allocation3] sm:$0xf] %vm84, 0.0
      %vm87 = vcmask 519168
      %88 = vst.msk [vmem:[#allocation4] sm:$0xf] %vm87, 0.0
      %v89 = vld [vmem:[#allocation7] sm:$0xf]
      %v90 = vld [vmem:[#allocation10] sm:$0xff]
      %v91 = vld [vmem:[#allocation10 + $0x8] sm:$0xff]
      %v92 = vld [vmem:[#allocation10 + $0x10] sm:$0xff]
      %v93 = vld [vmem:[#allocation10 + $0x18] sm:$0xff]
      %vm94 = vcmask 261120
      %v96 = vsel %vm94, %v89, 0
      %98 = vmatprep.subr.mxu0 0.0
      %99 = vmatpush1.msra.mxu0 %v90
      %100 = vmatprep.subr.mxu0 0.0
      %101 = vmatpush1.msra.mxu0 %v91
      %102 = vmatprep.subr.mxu0 0.0
      %103 = vmatpush1.msra.mxu0 %v92
      %104 = vmatprep.subr.mxu0 0.0
      %105 = vmatpush1.msra.mxu0 %v93
      %106 = vmatprep.subr.mxu0 0.0
      %107 = vmatpush1.msra.mxu0 0.0
      %108 = vmatprep.subr.mxu0 0.0
      %109 = vmatpush1.msra.mxu0 0.0
      %110 = vmatprep.subr.mxu0 0.0
      %111 = vmatpush1.msra.mxu0 0.0
      %112 = vmatprep.subr.mxu0 0.0
      %113 = vmatpush1.msra.mxu0 0.0
      %114 = vmatprep.subr.mxu0 0.0
      %115 = vmatpush1.msra.mxu0 0.0
      %116 = vmatprep.subr.mxu0 0.0
      %117 = vmatpush1.msra.mxu0 0.0
      %118 = vmatprep.subr.mxu0 0.0
      %119 = vmatpush1.msra.mxu0 0.0
      %120 = vmatprep.subr.mxu0 0.0
      %121 = vmatpush1.msra.mxu0 0.0
      %122 = vmatprep.subr.mxu0 0.0
      %123 = vmatpush1.msra.mxu0 0.0
      %124 = vmatprep.subr.mxu0 0.0
      %125 = vmatpush1.msra.mxu0 0.0
      %126 = vmatprep.subr.mxu0 0.0
      %127 = vmatpush1.msra.mxu0 0.0
      %128 = vmatprep.subr.mxu0 0.0
      %129 = vmatpush1.msra.mxu0 0.0
      %130 = vmatprep.subr.mxu0 0.0
      %131 = vmatpush1.msra.mxu0 0.0
      %132 = vmatprep.subr.mxu0 0.0
      %133 = vmatpush1.msra.mxu0 0.0
      %134 = vmatprep.subr.mxu0 0.0
      %135 = vmatpush1.msra.mxu0 0.0
      %136 = vmatprep.subr.mxu0 0.0
      %137 = vmatpush1.msra.mxu0 0.0
      %138 = vmatprep.subr.mxu0 0.0
      %139 = vmatpush1.msra.mxu0 0.0
      %140 = vmatprep.subr.mxu0 0.0
      %141 = vmatpush1.msra.mxu0 0.0
      %142 = vmatprep.subr.mxu0 0.0
      %143 = vmatpush1.msra.mxu0 0.0
      %144 = vmatprep.subr.mxu0 0.0
      %145 = vmatpush1.msra.mxu0 0.0
      %146 = vmatprep.subr.mxu0 0.0
      %147 = vmatpush1.msra.mxu0 0.0
      %148 = vmatprep.subr.mxu0 0.0
      %149 = vmatpush1.msra.mxu0 0.0
      %150 = vmatprep.subr.mxu0 0.0
      %151 = vmatpush1.msra.mxu0 0.0
      %152 = vmatprep.subr.mxu0 0.0
      %153 = vmatpush1.msra.mxu0 0.0
      %154 = vmatprep.subr.mxu0 0.0
      %155 = vmatpush1.msra.mxu0 0.0
      %156 = vmatprep.subr.mxu0 0.0
      %157 = vmatpush1.msra.mxu0 0.0
      %158 = vmatprep.subr.mxu0 0.0
      %159 = vmatpush1.msra.mxu0 0.0
      %160 = vmatprep.subr.mxu0 0.0
      %161 = vmatpush1.msra.mxu0 0.0
      %162 = vmatprep.mubr.f32.mxu0 0.0
      %163 = vmatmul.mubr.f32.gmra.mrb[0].mxu0 %v96
      %v164 = vpop.f32.mrb[0].mxu0
      %v165 = vadd.f32 0.0, %v164
      %v166 = vpop.f32.mrb[0].mxu0
      %167 = vdwg.mxu0
      %vm168 = vcmask 257024
      %169 = vst.msk [vmem:[#allocation5] sm:$0xf] %vm168, %v165
    $region45: #{tpu_custom_call.1} parent=1 // pred_fallthru
      _
    %v170 = vld [vmem:[#allocation12] sm:$0xff]
    %v171 = vld [vmem:[#allocation12 + $0x8] sm:$0xff]
    %v172 = vld [vmem:[#allocation12 + $0x10] sm:$0xff]
    %v173 = vld [vmem:[#allocation12 + $0x18] sm:$0xff]
    %v174 = vld [vmem:[#allocation5] sm:$0xf]
    %v177 = vunpack.c.l.s4 1966171168
    %v178 = vunpack.c.0.s8 %v177
    %v179 = vlaneseq
    %v180 = vshrl.u32 %v179, 7
    %v181 = vsub.s32 %v178, %v180
    %v182 = vrot.slane %v174, %v181
    %v183 = vcombine.high %v182, %v182
    %v185 = vunpack.c.l.s4 1966171168
    %v186 = vunpack.c.0.s8 %v185
    %v187 = vlaneseq
    %v188 = vshrl.u32 %v187, 7
    %v189 = vsub.s32 %v186, %v188
    %v190 = vrot.slane %v182, %v189
    %v192 = vunpack.c.l.s4 1966171168
    %v193 = vunpack.c.0.s8 %v192
    %v194 = vlaneseq
    %v195 = vshrl.u32 %v194, 7
    %v196 = vsub.s32 %v193, %v195
    %v197 = vrot.slane %v183, %v196
    %v198 = vcombine.high %v190, %v190
    %v199 = vcombine.high %v197, %v197
    %v200 = vlaneseq
    %v201 = vshrl.u32 %v200, 7
    %v202 = vsub.s32 0, %v201
    %v203 = vrot.slane %v190, %v202
    %v204 = vlaneseq
    %v205 = vshrl.u32 %v204, 7
    %v206 = vsub.s32 0, %v205
    %v207 = vrot.slane %v197, %v206
    %v208 = vlaneseq
    %v209 = vshrl.u32 %v208, 7
    %v210 = vsub.s32 0, %v209
    %v211 = vrot.slane %v198, %v210
    %v212 = vlaneseq
    %v213 = vshrl.u32 %v212, 7
    %v214 = vsub.s32 0, %v213
    %v215 = vrot.slane %v199, %v214
    %v220 = vadd.f32 %v203, %v170
    %v221 = vadd.f32 %v207, %v171
    %v222 = vadd.f32 %v211, %v172
    %v223 = vadd.f32 %v215, %v173
    %v224 = vtanh.pop %v220
    %v225 = vtanh.pop %v221
    %v226 = vtanh.pop %v222
    %v227 = vtanh.pop %v223
    %v228 = vld [vmem:[%s3] sm:$0x1]
    %v230 = vlaneseq
    %v231 = vshrl.u32 %v230, 7
    %v232 = vsub.s32 0, %v231
    %v233 = vrot.slane %v228, %v232
    %v235 = vmul.f32 %v224, %v233
    %v236 = vmul.f32 %v225, %v233
    %v237 = vmul.f32 %v226, %v233
    %v238 = vmul.f32 %v227, %v233
    %vm239 = vcmask 261120
    %v240 = vsel %vm239, %v235, 0.0
    %241 = vadd.xlane.f32.xlu0 %v240
    %v242 = vpop.xlane.xlu0 %241
    %v243 = vsel %vm239, %v236, 0.0
    %244 = vadd.xlane.f32.xlu0 %v243
    %v245 = vpop.xlane.xlu0 %244
    %v246 = vsel %vm239, %v237, 0.0
    %247 = vadd.xlane.f32.xlu0 %v246
    %v248 = vpop.xlane.xlu0 %247
    %v249 = vsel %vm239, %v238, 0.0
    %250 = vadd.xlane.f32.xlu0 %v249
    %v251 = vpop.xlane.xlu0 %250
    %v252 = vld [vmem:[%s4] sm:$0xf]
    %vm253 = vcmp.eq.s32.totalorder %v252, 0
    %v258 = vlaneseq
    %v259 = vand.u32 %v258, 127
    %v260 = vlaneseq
    %v261 = vshrl.u32 %v260, 7
    %v262 = vsub.s32 %v259, %v261
    %v263 = vrot.slane %v242, %v262
    %v264 = vlaneseq
    %v265 = vshrl.u32 %v264, 7
    %v266 = vsub.s32 %v259, %v265
    %v267 = vrot.slane %v245, %v266
    %v268 = vlaneseq
    %v269 = vshrl.u32 %v268, 7
    %v270 = vsub.s32 %v259, %v269
    %v271 = vrot.slane %v248, %v270
    %v272 = vlaneseq
    %v273 = vshrl.u32 %v272, 7
    %v274 = vsub.s32 %v259, %v273
    %v275 = vrot.slane %v251, %v274
    %vm276 = vcmask 1041409
    %v277 = vsel %vm276, %v267, %v263
    %vm278 = vcmask 1042434
    %v279 = vsel %vm278, %v271, %v277
    %vm280 = vcmask 1043459
    %v281 = vsel %vm280, %v275, %v279
    %v283 = vsel %vm253, -inf, %v281
    %s284 = smul.u32 0, 4
    %s285 = scalar_lea.vmem [#allocation6], %s284
    %vm286 = vcmask 60416
    %287 = vst.msk [vmem:[%s285] sm:$0xf] %vm286, %v283
    %v288 = vld [vmem:[#allocation2] sm:$0xf]
    %v289 = vsel %vm286, %v283, -inf
    %290 = vmax.xlane.f32.xlu0 %v289
    %v291 = vpop.xlane.xlu0 %290
    %v292 = vmax.f32 %v288, %v291
    %vm293 = vcmp.eq.f32.partialorder %v292, -inf
    %v294 = vsub.f32 %v288, %v292
    %v295 = vmul.f32 %v294, 1.442695
    %v296 = vpow.pop %v295
    %v297 = vsel %vm293, 0.0, %v296
    %299 = vset.pattern.permute.xlu0 0
    %300 = vperm.xlu0 %299, %v292
    %v301 = vpop.permute.xlu0 %300
    %v303 = vsub.f32 %v283, %v301
    %v304 = vmul.f32 %v303, 1.442695
    %v305 = vpow.pop %v304
    %v306 = vsel %vm293, 1, 0
    %307 = vset.pattern.permute.xlu0 0
    %308 = vperm.xlu0 %307, %v306
    %v309 = vpop.permute.xlu0 %308
    %vm310 = vcmp.eq.s32.totalorder %v309, 1
    %v311 = vsel %vm310, 0.0, %v305
    %v312 = vld [vmem:[#allocation3] sm:$0xf]
    %v313 = vmul.f32 %v297, %v312
    %v314 = vsel %vm286, %v311, 0.0
    %315 = vadd.xlane.f32.xlu0 %v314
    %v316 = vpop.xlane.xlu0 %315
    %v317 = vadd.f32 %v313, %v316
    %vm318 = vcmask 3072
    %319 = vst.msk [vmem:[#allocation3] sm:$0xf] %vm318, %v317
    %v320 = vld [vmem:[#allocation13] sm:$0xff]
    %v321 = vld [vmem:[#allocation13 + $0x8] sm:$0xff]
    %v322 = vld [vmem:[#allocation13 + $0x10] sm:$0xff]
    %v323 = vld [vmem:[#allocation13 + $0x18] sm:$0xff]
    %v324 = vld [vmem:[#allocation4] sm:$0xf]
    %326 = vset.pattern.permute.xlu0 0
    %327 = vperm.xlu0 %326, %v297
    %v328 = vpop.permute.xlu0 %327
    %v330 = vmul.f32 %v328, %v324
    %v331 = vlaneseq
    %v332 = vshrl.u32 %v331, 7
    %v333 = vsub.s32 0, %v332
    %v334 = vrot.slane %v311, %v333
    %336 = vbcast.lane.b32.xlu0 %v334, 256
    %v337 = vpop.permute.xlu0 %336
    %v338 = vlaneseq
    %v339 = vshrl.u32 %v338, 7
    %v340 = vsub.s32 1, %v339
    %v341 = vrot.slane %v311, %v340
    %343 = vbcast.lane.b32.xlu0 %v341, 256
    %v344 = vpop.permute.xlu0 %343
    %v345 = vlaneseq
    %v346 = vshrl.u32 %v345, 7
    %v347 = vsub.s32 2, %v346
    %v348 = vrot.slane %v311, %v347
    %350 = vbcast.lane.b32.xlu0 %v348, 256
    %v351 = vpop.permute.xlu0 %350
    %v352 = vlaneseq
    %v353 = vshrl.u32 %v352, 7
    %v354 = vsub.s32 3, %v353
    %v355 = vrot.slane %v311, %v354
    %357 = vbcast.lane.b32.xlu0 %v355, 256
    %v358 = vpop.permute.xlu0 %357
    %v359 = vmul.f32 %v337, %v320
    %v360 = vmul.f32 %v344, %v321
    %v361 = vmul.f32 %v351, %v322
    %v362 = vmul.f32 %v358, %v323
    %vm363 = vcmask 523264
    %v364 = vsel %vm363, %v359, 0.0
    %v365 = vrot.slane %v364, 4
    %v366 = vadd.f32 %v364, %v365
    %v367 = vrot.slane %v366, 2
    %v368 = vadd.f32 %v366, %v367
    %v369 = vrot.slane %v368, 1
    %v370 = vadd.f32 %v368, %v369
    %v371 = vsel %vm363, %v360, 0.0
    %v372 = vrot.slane %v371, 4
    %v373 = vadd.f32 %v371, %v372
    %v374 = vrot.slane %v373, 2
    %v375 = vadd.f32 %v373, %v374
    %v376 = vrot.slane %v375, 1
    %v377 = vadd.f32 %v375, %v376
    %v378 = vsel %vm363, %v361, 0.0
    %v379 = vrot.slane %v378, 4
    %v380 = vadd.f32 %v378, %v379
    %v381 = vrot.slane %v380, 2
    %v382 = vadd.f32 %v380, %v381
    %v383 = vrot.slane %v382, 1
    %v384 = vadd.f32 %v382, %v383
    %v385 = vsel %vm363, %v362, 0.0
    %v386 = vrot.slane %v385, 4
    %v387 = vadd.f32 %v385, %v386
    %v388 = vrot.slane %v387, 2
    %v389 = vadd.f32 %v387, %v388
    %v390 = vrot.slane %v389, 1
    %v391 = vadd.f32 %v389, %v390
    %v396 = vsel %vm276, %v377, %v370
    %v397 = vsel %vm278, %v384, %v396
    %v398 = vsel %vm280, %v391, %v397
    %v400 = vadd.f32 %v330, %v398
    %vm401 = vcmask 519168
    %402 = vst.msk [vmem:[#allocation4] sm:$0xf] %vm401, %v400
    %403 = vst.msk [vmem:[#allocation2] sm:$0xf] %vm318, %v292
    // Predicated region
    $region46: #{tpu_custom_call.1} parent=1 // pred_check
      %p404 = pneg %p80
    $region47: #{tpu_custom_call.1} parent=1 // pred_check_branch
      %406 = sbr.rel (%p404) target = $region49
    $region48: #{tpu_custom_call.1} parent=1 // pred_region
      %v407 = vld [vmem:[#allocation2] sm:$0xf]
      %v408 = vld [vmem:[#allocation3] sm:$0xf]
      %v409 = vld [vmem:[#allocation4] sm:$0xf]
      %411 = vset.pattern.permute.xlu0 0
      %412 = vperm.xlu0 %411, %v408
      %v413 = vpop.permute.xlu0 %412
      %v415 = vrcp.pop %v413
      %v416 = vmul.f32 %v409, %v415
      %417 = vst.msk [vmem:[#allocation15] sm:$0xf] %vm401, %v416
      %v418 = vld [vmem:[#allocation6] sm:$0xf]
      %420 = vset.pattern.permute.xlu0 0
      %421 = vperm.xlu0 %420, %v407
      %v422 = vpop.permute.xlu0 %421
      %v424 = vsub.f32 %v418, %v422
      %v425 = vmul.f32 %v424, 1.442695
      %v426 = vpow.pop %v425
      %v427 = vmul.f32 %v426, %v415
      %428 = vst.msk [vmem:[#allocation16] sm:$0xf] %vm286, %v427
    $region49: #{tpu_custom_call.1} parent=1 // pred_fallthru
      _
    // Predicated region
    $region50: #{tpu_custom_call.1} parent=1 // pred_check
      _
    $region51: #{tpu_custom_call.1} parent=1 // pred_check_branch
      %430 = sbr.rel (0) target = $region53
    $region52: #{tpu_custom_call.1} parent=1 // pred_region
      %s432 = ssub.s32 64, 64
      %433 = vsyncadd [#allocation9], %s432
      %s435 = sshll.u32 [#allocation15], 4
      %s436 = int_to_ptr.vmem [resolvable:$true] %s435
      %438 = dma.vmem_to_hbm [thread:$0]  %s436, 64, %s6, [#allocation9]
    $region53: #{tpu_custom_call.1} parent=1 // pred_fallthru
      _
    // Predicated region
    $region54: #{tpu_custom_call.1} parent=1 // pred_check
      _
    $region55: #{tpu_custom_call.1} parent=1 // pred_check_branch
      %440 = sbr.rel (0) target = $region57
    $region56: #{tpu_custom_call.1} parent=1 // pred_region
      %s442 = ssub.s32 64, 64
      %443 = vsyncadd [#allocation17], %s442
      %s445 = sshll.u32 [#allocation16], 4
      %s446 = int_to_ptr.vmem [resolvable:$true] %s445
      %448 = dma.vmem_to_hbm [thread:$0]  %s446, 64, %s7, [#allocation17]
    $region57: #{tpu_custom_call.1} parent=1 // pred_fallthru
      _
    // Predicated region
    $region58: #{tpu_custom_call.1} parent=1 // pred_check
      _
    $region59: #{tpu_custom_call.1} parent=1 // pred_check_branch
      %450 = sbr.rel (0) target = $region61
    $region60: #{tpu_custom_call.1} parent=1 // pred_region
      %451 = dma.done [#allocation9], 64
    $region61: #{tpu_custom_call.1} parent=1 // pred_fallthru
      _
    // Predicated region
    $region62: #{tpu_custom_call.1} parent=1 // pred_check
      _
    $region63: #{tpu_custom_call.1} parent=1 // pred_check_branch
      %453 = sbr.rel (0) target = $region65
    $region64: #{tpu_custom_call.1} parent=1 // pred_region
      %454 = dma.done [#allocation17], 64
    $region65: #{tpu_custom_call.1} parent=1 // pred_fallthru
      _
    %455 = vsyncpa [#allocation8], 1
    %456 = vsyncpa [#allocation11], 1
    %457 = vsyncpa [#allocation14], 1
    %458 = vsyncpa [#allocation9], 1
    %459 = vsyncpa [#allocation17], 1

</llo_original>
